<compile_context>
chip_gen: v5e
topology: v5e:2x2
jax: 0.10.0
libtpu: 0.0.40
codegen_flags: <defaults>
</compile_context>

<pallas_src>
import jax
import jax.numpy as jnp
from jax.experimental import pallas as pl
from jax.experimental.pallas import tpu as pltpu


_LANES = 1024        # lane-dense width (multiple of 128)
_BLOCK_ROWS = 512    # 512 x 1024 f32 = 2 MiB per block


def _heaviside_kernel(x_ref, o_ref):
    x = x_ref[...]
    # heaviside(x, 0.0): 1 where x > 0, 0 where x <= 0, NaN propagates.
    h = (x > 0).astype(x.dtype)
    o_ref[...] = jnp.where(x != x, x, h)   # x != x <=> isnan(x); passes NaN through


def heaviside_a(x: jax.Array) -> jax.Array:
    """Elementwise heaviside(x, 0.0) implemented with a Pallas TPU kernel."""
    orig_shape = x.shape
    orig_dtype = x.dtype
    n = x.size

    # ---- Flatten to a lane-dense (rows, _LANES) slab, padding the tail. ----
    rows_needed = pl.cdiv(n, _LANES)
    if rows_needed >= _BLOCK_ROWS:
        block_rows = _BLOCK_ROWS
        rows = pl.cdiv(rows_needed, _BLOCK_ROWS) * _BLOCK_ROWS
    else:
        # Small input: single block whose shape equals the full array dims
        # (so the (8,128) divisibility constraint does not apply).
        rows = max(rows_needed, 1)
        block_rows = rows

    padded = rows * _LANES
    flat = x.reshape(-1)
    if padded != n:
        flat = jnp.pad(flat, (0, padded - n))
    x2d = flat.reshape(rows, _LANES)

    grid = (rows // block_rows,)

    out = pl.pallas_call(
        _heaviside_kernel,
        out_shape=jax.ShapeDtypeStruct((rows, _LANES), orig_dtype),
        grid=grid,
        in_specs=[pl.BlockSpec((block_rows, _LANES), lambda i: (i, 0))],
        out_specs=pl.BlockSpec((block_rows, _LANES), lambda i: (i, 0)),
        compiler_params=pltpu.CompilerParams(
            dimension_semantics=("parallel",),
            vmem_limit_bytes=32 * 1024 * 1024,
        ),
    )(x2d)

    # Drop the pad region, restore the original NCHW shape.
    return out.reshape(-1)[:n].reshape(orig_shape)


if __name__ == "__main__":
    key = jax.random.PRNGKey(0)
    # Small NCHW input consistent with a conv-style module interface.
    x = jax.random.normal(key, (2, 4, 16, 16), dtype=jnp.float32)
    # Make sure some exact zeros are present to exercise the x == 0 branch.
    x = x.at[0, 0, 0, :4].set(0.0)

    y = heaviside_a(x)
    y = jax.block_until_ready(y)

    # Sanity check against pure-JAX reference of np.heaviside(x, 0.0).
    ref = jnp.where(jnp.isnan(x), x, jnp.where(x > 0, 1.0, 0.0)).astype(x.dtype)
    assert y.shape == x.shape and y.dtype == x.dtype
    assert bool(jnp.all(y == ref))

    print("KERNEL_OK")
</pallas_src>

<mosaic_0001>
module attributes {stable_mosaic.version = 11 : i64} {
  func.func @_heaviside_kernel(%arg0: i32, %arg1: memref<2x1024xf32, #tpu.memory_space<vmem>>, %arg2: memref<2x1024xf32, #tpu.memory_space<vmem>>) attributes {dimension_semantics = [#tpu.dimension_semantics<parallel>], iteration_bounds = array<i64: 1>, scalar_prefetch = 0 : i64, scratch_operands = 0 : i64, tpu.core_type = #tpu.core_type<tc>, window_params = [{transform_indices = @transform_0, window_bounds = array<i64: 2, 1024>}, {transform_indices = @transform_1, window_bounds = array<i64: 2, 1024>}]} {
    %c0 = arith.constant 0 : index
    %c0_0 = arith.constant 0 : index
    %0 = vector.load %arg1[%c0, %c0_0] : memref<2x1024xf32, #tpu.memory_space<vmem>>, vector<2x1024xf32>
    %cst = arith.constant 0.000000e+00 : f32
    %1 = vector.broadcast %cst : f32 to vector<2x1024xf32>
    %2 = arith.cmpf ogt, %0, %1 : vector<2x1024xf32>
    %3 = arith.extui %2 : vector<2x1024xi1> to vector<2x1024xi32>
    %4 = arith.sitofp %3 : vector<2x1024xi32> to vector<2x1024xf32>
    %5 = arith.cmpf one, %0, %0 : vector<2x1024xf32>
    %6 = arith.select %5, %0, %4 : vector<2x1024xi1>, vector<2x1024xf32>
    %c0_1 = arith.constant 0 : index
    %c0_2 = arith.constant 0 : index
    %7 = vector.load %arg2[%c0_1, %c0_2] : memref<2x1024xf32, #tpu.memory_space<vmem>>, vector<2x1024xf32>
    tpu.vector_store %arg2[%c0_1, %c0_2], %6 {strides = array<i32>} : memref<2x1024xf32, #tpu.memory_space<vmem>>, vector<2x1024xf32>,
    return
  }
  func.func @transform_0(%arg0: i32) -> (i32, i32) {
    %c0_i32 = arith.constant 0 : i32
    %c0_i32_0 = arith.constant 0 : i32
    return %arg0, %c0_i32 : i32, i32
  }
  func.func @transform_1(%arg0: i32) -> (i32, i32) {
    %c0_i32 = arith.constant 0 : i32
    %c0_i32_0 = arith.constant 0 : i32
    return %arg0, %c0_i32 : i32, i32
  }
}

</mosaic_0001>

<llo_original>
// kernel: tpu_custom_call.1
$region0: #{tpu_custom_call.1}
  #allocation0 [shape = 'u32[]', space=smem, size = 0x4, offset = 0x4, fixed_abs, tag = 'smem constant byte address 0x4 - core index']
  #allocation1 [shape = 'u32[72,128]{1,0:T(1,128)}', space=vmem, size = 0x9000, scoped, tag = 'internal scratch']
  %s0 = inlined_call_operand.hbm [shape: f32[2,1024], index: 0, kind: input, shape index: {}]
  %s1 = inlined_call_operand.hbm [shape: f32[2,1024], index: 1, kind: output, shape index: {}]
  %s2 = sld [smem:[#allocation0]]
  $region18: #{tpu_custom_call.1} parent=0
    _
  %s4 = ssub.s32 1, %s2
  %s5 = scalar_select 0, %s4, %s2
  $region1: #{tpu_custom_call.1} parent=0
    #allocation2 [shape = 'u8[8192]{0}', space=vmem, size = 0x2000, scoped, tag = 'input window, operand 0, single buffered']
    #allocation3 [shape = 's32[1]{0}', space=sflag, size = 0x4, scoped, tag = 'scoped memory for tpu_custom_call.1']
    #allocation4 [shape = 's32[1]{0}', space=sflag, size = 0x4, scoped, tag = 'scoped memory for tpu_custom_call.1']
    #allocation5 [shape = 'u8[8192]{0}', space=vmem, size = 0x2000, scoped, tag = 'output window, operand 0, single buffered']
    %6 = vsyncpa [#allocation3], 0
    %7 = vsyncpa [#allocation4], 0
    // Predicated region
    $region2: #{tpu_custom_call.1} parent=1 // pred_check
      _
    $region3: #{tpu_custom_call.1} parent=1 // pred_check_branch
      %9 = sbr.rel (0) target = $region5
    $region4: #{tpu_custom_call.1} parent=1 // pred_region
      %11 = vsyncadd [#allocation3], 0
      %s13 = sshll.u32 %s0, 4
      %s14 = int_to_ptr.hbm [resolvable:$true] %s13
      %s15 = sshll.u32 [#allocation2], 4
      %s16 = int_to_ptr.vmem [resolvable:$true] %s15
      %18 = dma.hbm_to_vmem [thread:$0]  %s14, 256, %s16, [#allocation3]
    $region5: #{tpu_custom_call.1} parent=1 // pred_fallthru
      _
    // Predicated region
    $region6: #{tpu_custom_call.1} parent=1 // pred_check
      _
    $region7: #{tpu_custom_call.1} parent=1 // pred_check_branch
      %20 = sbr.rel (0) target = $region9
    $region8: #{tpu_custom_call.1} parent=1 // pred_region
      %22 = dma.done [#allocation3], 256
    $region9: #{tpu_custom_call.1} parent=1 // pred_fallthru
      _
    %v23 = vld [vmem:[#allocation2] sm:$0xff]
    %v24 = vld [vmem:[#allocation2 + $0x8] sm:$0xff]
    %vm25 = vcmp.gt.f32.partialorder %v23, 0.0
    %vm26 = vcmp.gt.f32.partialorder %v24, 0.0
    %v27 = vsel %vm25, 1, 0
    %v28 = vsel %vm26, 1, 0
    %v29 = vcvt.s32.f32 %v27
    %v30 = vcvt.s32.f32 %v28
    %vm31 = vcmp.ne.f32.partialorder %v23, %v23
    %vm32 = vcmp.ne.f32.partialorder %v24, %v24
    %v33 = vsel %vm31, %v23, %v29
    %v34 = vsel %vm32, %v24, %v30
    %35 = vst [vmem:[#allocation5] sm:$0xff] %v33
    %36 = vst [vmem:[#allocation5 + $0x8] sm:$0xff] %v34
    // Predicated region
    $region10: #{tpu_custom_call.1} parent=1 // pred_check
      _
    $region11: #{tpu_custom_call.1} parent=1 // pred_check_branch
      %38 = sbr.rel (0) target = $region13
    $region12: #{tpu_custom_call.1} parent=1 // pred_region
      %40 = vsyncadd [#allocation4], 0
      %s42 = sshll.u32 [#allocation5], 4
      %s43 = int_to_ptr.vmem [resolvable:$true] %s42
      %s44 = sshll.u32 %s1, 4
      %s45 = int_to_ptr.hbm [resolvable:$true] %s44
      %47 = dma.vmem_to_hbm [thread:$0]  %s43, 256, %s45, [#allocation4]
    $region13: #{tpu_custom_call.1} parent=1 // pred_fallthru
      _
    // Predicated region
    $region14: #{tpu_custom_call.1} parent=1 // pred_check
      _
    $region15: #{tpu_custom_call.1} parent=1 // pred_check_branch
      %49 = sbr.rel (0) target = $region17
    $region16: #{tpu_custom_call.1} parent=1 // pred_region
      %51 = dma.done [#allocation4], 256
    $region17: #{tpu_custom_call.1} parent=1 // pred_fallthru
      _
    %52 = vsyncpa [#allocation3], 1
    %53 = vsyncpa [#allocation4], 1

</llo_original>
